<compile_context>
chip_gen: v6e
topology: v6e:2x2x1
jax: 0.10.0
libtpu: 0.0.40
codegen_flags: <defaults>
</compile_context>

<pallas_src>
import functools

import numpy as np
import jax
import jax.numpy as jnp
from jax import lax
from jax.experimental import pallas as pl
from jax.experimental.pallas import tpu as pltpu


def _cutout_kernel(params_ref, img_ref, out_ref, *, replace, tile_h):
    # params_ref : SMEM (5,) int32 scalar-prefetch = [apply, y0, y1, x0, x1]
    # img_ref    : VMEM (C, tile_h, W) uint8
    # out_ref    : VMEM (C, tile_h, W) uint8
    apply_flag = params_ref[0] > 0
    y0 = params_ref[1]
    y1 = params_ref[2]
    x0 = params_ref[3]
    x1 = params_ref[4]

    row_base = pl.program_id(0) * tile_h
    # Only do the masked fill when cutout is active AND this row tile overlaps
    # the cut rectangle; everything else is a cheap uint8 block copy.
    intersects = apply_flag & (row_base < y1) & (row_base + tile_h > y0)

    w = out_ref.shape[2]

    @pl.when(intersects)
    def _():
        # Mask computed once at (1, TH, W), broadcast across channels by where.
        mask_shape = (1, tile_h, w)
        rows = row_base + lax.broadcasted_iota(jnp.int32, mask_shape, 1)
        cols = lax.broadcasted_iota(jnp.int32, mask_shape, 2)
        in_cut = (rows >= y0) & (rows < y1) & (cols >= x0) & (cols < x1)
        fill = jnp.asarray(replace, dtype=out_ref.dtype)
        out_ref[...] = jnp.where(in_cut, fill, img_ref[...])

    @pl.when(jnp.logical_not(intersects))
    def _():
        out_ref[...] = img_ref[...]


def _choose_tile_h(C, H, W):
    # Whole image in one block when small enough (~8 MiB uint8 per buffer).
    if C * H * W <= 8 * 1024 * 1024:
        return H
    # Otherwise row-tile: ~2 MiB uint8 blocks, rows a multiple of 32 (uint8
    # sublane packing), never exceeding H.
    rows = max(32, (2 * 1024 * 1024) // max(C * W, 1))
    rows = max(32, (rows // 32) * 32)
    return min(H, rows)


def _cutout_pallas(image_u8, params, replace):
    C, H, W = image_u8.shape
    tile_h = _choose_tile_h(C, H, W)
    n_row_tiles = pl.cdiv(H, tile_h)

    kernel = functools.partial(_cutout_kernel, replace=int(replace), tile_h=tile_h)

    grid_spec = pltpu.PrefetchScalarGridSpec(
        num_scalar_prefetch=1,
        grid=(n_row_tiles,),
        in_specs=[pl.BlockSpec((C, tile_h, W), lambda r, params: (0, r, 0))],
        out_specs=pl.BlockSpec((C, tile_h, W), lambda r, params: (0, r, 0)),
    )
    return pl.pallas_call(
        kernel,
        out_shape=jax.ShapeDtypeStruct((C, H, W), image_u8.dtype),
        grid_spec=grid_spec,
        compiler_params=pltpu.CompilerParams(
            dimension_semantics=("parallel",)),
    )(params, image_u8)


def cutout(image_u8, pad_size, replace, p, key):
    """JAX/Pallas equivalent of `functional.cutout` gated by Bernoulli(p)."""
    C, H, W = image_u8.shape
    k_coin, k_y, k_x = jax.random.split(key, 3)
    apply_flag = jax.random.uniform(k_coin, ()) < p
    cy = jax.random.randint(k_y, (), 0, H, dtype=jnp.int32)
    cx = jax.random.randint(k_x, (), 0, W, dtype=jnp.int32)
    pad = jnp.int32(pad_size)
    y0 = jnp.clip(cy - pad, 0, H)
    y1 = jnp.clip(cy + pad, 0, H)
    x0 = jnp.clip(cx - pad, 0, W)
    x1 = jnp.clip(cx + pad, 0, W)
    params = jnp.stack(
        [apply_flag.astype(jnp.int32), y0, y1, x0, x1]).astype(jnp.int32)
    return _cutout_pallas(image_u8, params, replace)


class Cutout:
    """JAX port of Cutout(p, pad_size, replace): random square fill with prob p."""

    def __init__(self, p, pad_size, replace=128):
        self.p = float(p)
        self.pad_size = int(pad_size)
        self.replace = int(replace)

    def __call__(self, image, bboxs, key):
        cut_image = cutout(image, self.pad_size, self.replace, self.p, key)
        return (cut_image, bboxs)


def _reference(image_u8, pad_size, replace, applied, cy, cx):
    """NumPy reference of cutout with the same random decisions."""
    out = np.asarray(image_u8).copy()
    if not applied:
        return out
    _, H, W = out.shape
    y0, y1 = max(cy - pad_size, 0), min(cy + pad_size, H)
    x0, x1 = max(cx - pad_size, 0), min(cx + pad_size, W)
    out[:, y0:y1, x0:x1] = replace
    return out


if __name__ == "__main__":
    key = jax.random.PRNGKey(0)
    k_img, k_aug = jax.random.split(key)

    C, H, W = 3, 16, 16
    image = jax.random.randint(k_img, (C, H, W), 0, 256,
                               dtype=jnp.int32).astype(jnp.uint8)
    bboxs = jnp.array([[2, 3, 10, 12],
                       [5, 5, 9, 9]], dtype=jnp.int32)

    # p=1.0 so the cutout path is exercised deterministically in this demo.
    module = Cutout(p=1.0, pad_size=4, replace=128)
    out, out_bboxs = module(image, bboxs, k_aug)
    out = jax.block_until_ready(out)

    # Rebuild the same RNG decisions for the NumPy reference.
    k_coin, k_y, k_x = jax.random.split(k_aug, 3)
    applied = bool(jax.random.uniform(k_coin, ()) < module.p)
    cy = int(jax.random.randint(k_y, (), 0, H, dtype=jnp.int32))
    cx = int(jax.random.randint(k_x, (), 0, W, dtype=jnp.int32))
    ref = _reference(image, module.pad_size, module.replace, applied, cy, cx)
    assert np.array_equal(np.asarray(out), ref), "Pallas output != reference"
    assert out_bboxs is bboxs

    # p=0.0 -> identity path (kernel copies the image through unchanged).
    module_off = Cutout(p=0.0, pad_size=4, replace=128)
    out_off, _ = module_off(image, bboxs, k_aug)
    out_off = jax.block_until_ready(out_off)
    assert np.array_equal(np.asarray(out_off), np.asarray(image))

    print("KERNEL_OK")
</pallas_src>

<mosaic_0001>
module attributes {stable_mosaic.version = 11 : i64} {
  func.func @_cutout_kernel(%arg0: i32, %arg1: memref<5xi32, #tpu.memory_space<smem>>, %arg2: memref<3x16x16xi8, #tpu.memory_space<vmem>>, %arg3: memref<3x16x16xi8, #tpu.memory_space<vmem>>) attributes {dimension_semantics = [#tpu.dimension_semantics<parallel>], iteration_bounds = array<i64: 1>, scalar_prefetch = 1 : i64, scratch_operands = 0 : i64, tpu.core_type = #tpu.core_type<tc>, window_params = [{transform_indices = @transform_0, window_bounds = array<i64: 3, 16, 16>}, {transform_indices = @transform_1, window_bounds = array<i64: 3, 16, 16>}]} {
    %c0 = arith.constant 0 : index
    %0 = memref.load %arg1[%c0] : memref<5xi32, #tpu.memory_space<smem>>
    %c0_i32 = arith.constant 0 : i32
    %1 = arith.cmpi sgt, %0, %c0_i32 : i32
    %c1 = arith.constant 1 : index
    %2 = memref.load %arg1[%c1] : memref<5xi32, #tpu.memory_space<smem>>
    %c2 = arith.constant 2 : index
    %3 = memref.load %arg1[%c2] : memref<5xi32, #tpu.memory_space<smem>>
    %c3 = arith.constant 3 : index
    %4 = memref.load %arg1[%c3] : memref<5xi32, #tpu.memory_space<smem>>
    %c4 = arith.constant 4 : index
    %5 = memref.load %arg1[%c4] : memref<5xi32, #tpu.memory_space<smem>>
    %c16_i32 = arith.constant 16 : i32
    %6 = arith.muli %arg0, %c16_i32 : i32
    %7 = arith.cmpi slt, %6, %3 : i32
    %8 = arith.andi %1, %7 : i1
    %c16_i32_0 = arith.constant 16 : i32
    %9 = arith.addi %6, %c16_i32_0 : i32
    %10 = arith.cmpi sgt, %9, %2 : i32
    %11 = arith.andi %8, %10 : i1
    %12 = arith.extui %11 : i1 to i32
    %c0_i32_1 = arith.constant 0 : i32
    %13 = arith.cmpi ne, %12, %c0_i32_1 : i32
    scf.if %13 {
      %17 = tpu.iota {dimensions = array<i32: 1>} : vector<1x16x16xi32>
      %18 = vector.broadcast %6 : i32 to vector<1x16x16xi32>
      %19 = arith.addi %18, %17 : vector<1x16x16xi32>
      %20 = tpu.iota {dimensions = array<i32: 2>} : vector<1x16x16xi32>
      %21 = vector.broadcast %2 : i32 to vector<1x16x16xi32>
      %22 = arith.cmpi sge, %19, %21 : vector<1x16x16xi32>
      %23 = vector.broadcast %3 : i32 to vector<1x16x16xi32>
      %24 = arith.cmpi slt, %19, %23 : vector<1x16x16xi32>
      %25 = arith.andi %22, %24 : vector<1x16x16xi1>
      %26 = vector.broadcast %4 : i32 to vector<1x16x16xi32>
      %27 = arith.cmpi sge, %20, %26 : vector<1x16x16xi32>
      %28 = arith.andi %25, %27 : vector<1x16x16xi1>
      %29 = vector.broadcast %5 : i32 to vector<1x16x16xi32>
      %30 = arith.cmpi slt, %20, %29 : vector<1x16x16xi32>
      %31 = arith.andi %28, %30 : vector<1x16x16xi1>
      %c0_3 = arith.constant 0 : index
      %c0_4 = arith.constant 0 : index
      %c0_5 = arith.constant 0 : index
      %32 = vector.load %arg2[%c0_3, %c0_4, %c0_5] : memref<3x16x16xi8, #tpu.memory_space<vmem>>, vector<3x16x16xi8>
      %c-128_i8 = arith.constant -128 : i8
      %33 = vector.shape_cast %31 : vector<1x16x16xi1> to vector<1x16x16xi1>
      %34 = vector.broadcast %33 : vector<1x16x16xi1> to vector<3x16x16xi1>
      %35 = vector.broadcast %c-128_i8 : i8 to vector<3x16x16xi8>
      %36 = arith.select %34, %35, %32 : vector<3x16x16xi1>, vector<3x16x16xi8>
      %c0_6 = arith.constant 0 : index
      %c0_7 = arith.constant 0 : index
      %c0_8 = arith.constant 0 : index
      %37 = vector.load %arg3[%c0_6, %c0_7, %c0_8] : memref<3x16x16xi8, #tpu.memory_space<vmem>>, vector<3x16x16xi8>
      tpu.vector_store %arg3[%c0_6, %c0_7, %c0_8], %36 {strides = array<i32>} : memref<3x16x16xi8, #tpu.memory_space<vmem>>, vector<3x16x16xi8>,
    } else {
    }
    %true = arith.constant true
    %14 = arith.xori %11, %true : i1
    %15 = arith.extui %14 : i1 to i32
    %c0_i32_2 = arith.constant 0 : i32
    %16 = arith.cmpi ne, %15, %c0_i32_2 : i32
    scf.if %16 {
      %c0_3 = arith.constant 0 : index
      %c0_4 = arith.constant 0 : index
      %c0_5 = arith.constant 0 : index
      %17 = vector.load %arg2[%c0_3, %c0_4, %c0_5] : memref<3x16x16xi8, #tpu.memory_space<vmem>>, vector<3x16x16xi8>
      %c0_6 = arith.constant 0 : index
      %c0_7 = arith.constant 0 : index
      %c0_8 = arith.constant 0 : index
      %18 = vector.load %arg3[%c0_6, %c0_7, %c0_8] : memref<3x16x16xi8, #tpu.memory_space<vmem>>, vector<3x16x16xi8>
      tpu.vector_store %arg3[%c0_6, %c0_7, %c0_8], %17 {strides = array<i32>} : memref<3x16x16xi8, #tpu.memory_space<vmem>>, vector<3x16x16xi8>,
    } else {
    }
    return
  }
  func.func @transform_0(%arg0: i32, %arg1: memref<5xi32, #tpu.memory_space<smem>>) -> (i32, i32, i32) {
    %c0_i32 = arith.constant 0 : i32
    %c0_i32_0 = arith.constant 0 : i32
    %c0_i32_1 = arith.constant 0 : i32
    return %c0_i32, %arg0, %c0_i32_0 : i32, i32, i32
  }
  func.func @transform_1(%arg0: i32, %arg1: memref<5xi32, #tpu.memory_space<smem>>) -> (i32, i32, i32) {
    %c0_i32 = arith.constant 0 : i32
    %c0_i32_0 = arith.constant 0 : i32
    %c0_i32_1 = arith.constant 0 : i32
    return %c0_i32, %arg0, %c0_i32_0 : i32, i32, i32
  }
}

</mosaic_0001>

<llo_original>
// kernel: tpu_custom_call.1
$region0: #{tpu_custom_call.1}
  #allocation0 [shape = 'u32[]', space=smem, size = 0x4, offset = 0x4, fixed_abs, tag = 'smem constant byte address 0x4 - core index']
  #allocation1 [shape = 'u32[144,128]{1,0:T(1,128)}', space=vmem, size = 0x12000, scoped, tag = 'internal scratch']
  #allocation2 [shape = 's32[1]{0}', space=sflag, size = 0x4, scoped, tag = 'scoped memory for tpu_custom_call.1']
  #allocation3 [shape = 'u8[512]{0}', space=smem, size = 0x200, scoped, tag = 'prefetched SMEM operand 0']
  %s0 = inlined_call_operand.hbm [shape: s32[5], index: 0, kind: input, shape index: {}]
  %s1 = inlined_call_operand.hbm [shape: u8[3,16,16], index: 1, kind: input, shape index: {}]
  %s2 = inlined_call_operand.hbm [shape: u8[3,16,16], index: 2, kind: output, shape index: {}]
  %s3 = sld [smem:[#allocation0]]
  $region26: #{tpu_custom_call.1} parent=0
    _
  %s5 = ssub.s32 1, %s3
  %s6 = scalar_select 0, %s5, %s3
  %8 = dma.hbm_to_smem %s0, 16, [#allocation3], [#allocation2]
  %9 = dma.done [#allocation2], 16
  %10 = sfence
  $region1: #{tpu_custom_call.1} parent=0
    #allocation4 [shape = 'u8[6144]{0}', space=vmem, size = 0x1800, scoped, tag = 'input window, operand 1, single buffered']
    #allocation5 [shape = 's32[1]{0}', space=sflag, size = 0x4, scoped, tag = 'scoped memory for tpu_custom_call.1']
    #allocation6 [shape = 's32[1]{0}', space=sflag, size = 0x4, scoped, tag = 'scoped memory for tpu_custom_call.1']
    #allocation7 [shape = 'u8[6144]{0}', space=vmem, size = 0x1800, scoped, tag = 'output window, operand 0, single buffered']
    %11 = vsyncpa [#allocation5], 0
    %12 = vsyncpa [#allocation6], 0
    // Predicated region
    $region2: #{tpu_custom_call.1} parent=1 // pred_check
      _
    $region3: #{tpu_custom_call.1} parent=1 // pred_check_branch
      %14 = sbr.rel (0) target = $region5
    $region4: #{tpu_custom_call.1} parent=1 // pred_region
      %s16 = ssub.s32 192, 192
      %17 = vsyncadd [#allocation5], %s16
      %s18 = sshll.u32 [#allocation4], 4
      %s19 = int_to_ptr.vmem [resolvable:$true] %s18
      %24 = dma.hbm_to_vmem [thread:$0]  %s1, 192, %s19, [#allocation5], 32, 32, 2
    $region5: #{tpu_custom_call.1} parent=1 // pred_fallthru
      _
    // Predicated region
    $region6: #{tpu_custom_call.1} parent=1 // pred_check
      _
    $region7: #{tpu_custom_call.1} parent=1 // pred_check_branch
      %26 = sbr.rel (0) target = $region9
    $region8: #{tpu_custom_call.1} parent=1 // pred_region
      %27 = dma.done [#allocation5], 192
    $region9: #{tpu_custom_call.1} parent=1 // pred_fallthru
      _
    %s29 = sld [smem:[#allocation3]]
    %p30 = scmp.gt.s32.totalorder %s29, 0
    %s31 = sld [smem:[#allocation3 + $0x1]]
    %s32 = sld [smem:[#allocation3 + $0x2]]
    %s33 = sld [smem:[#allocation3 + $0x3]]
    %s34 = sld [smem:[#allocation3 + $0x4]]
    %s35 = smul.u32 0, 16
    %p36 = scmp.lt.s32.totalorder %s35, %s32
    %p37 = pnand %p30, %p36
    %p38 = pneg %p37
    %s39 = sadd.s32 %s35, 16
    %p40 = scmp.gt.s32.totalorder %s39, %s31
    %p41 = pnand %p38, %p40
    %p42 = pneg %p41
    // Predicated region
    $region10: #{tpu_custom_call.1} parent=1 // pred_check
      _
    $region11: #{tpu_custom_call.1} parent=1 // pred_check_branch
      %44 = sbr.rel (%p41) target = $region13
    $region12: #{tpu_custom_call.1} parent=1 // pred_region
      %v45 = vlaneseq
      %v46 = vshrl.u32 %v45, 7
      %v47 = vadd.s32 %v46, 8
      %v48 = vstv %s35
      %v49 = vadd.s32 %v48, %v46
      %v50 = vadd.s32 %v48, %v47
      %v51 = vlaneseq
      %v52 = vand.u32 %v51, 127
      %v53 = vstv %s31
      %vm54 = vcmp.ge.s32.totalorder %v49, %v53
      %vm55 = vcmp.ge.s32.totalorder %v50, %v53
      %v56 = vstv %s32
      %vm57 = vcmp.lt.s32.totalorder %v49, %v56
      %vm58 = vcmp.lt.s32.totalorder %v50, %v56
      %vm59 = vmand %vm54, %vm57
      %vm60 = vmand %vm55, %vm58
      %v61 = vstv %s33
      %vm62 = vcmp.ge.s32.totalorder %v52, %v61
      %vm63 = vmand %vm59, %vm62
      %vm64 = vmand %vm60, %vm62
      %v65 = vstv %s34
      %vm66 = vcmp.lt.s32.totalorder %v52, %v65
      %vm67 = vmand %vm63, %vm66
      %vm68 = vmand %vm64, %vm66
      %v69 = vld [vmem:[#allocation4] sm:$0x3]
      %v70 = vld [vmem:[#allocation4 + $0x2] sm:$0x3]
      %v71 = vld [vmem:[#allocation4 + $0x4] sm:$0x3]
      %v72 = vld [vmem:[#allocation4 + $0x6] sm:$0x3]
      %v73 = vld [vmem:[#allocation4 + $0x8] sm:$0x3]
      %v74 = vld [vmem:[#allocation4 + $0xa] sm:$0x3]
      %v75 = vsel %vm67, 1, 0
      %v76 = vsel %vm68, 1, 0
      %vm77 = vcmp.eq.s32.totalorder %v75, 1
      %vm78 = vcmp.eq.s32.totalorder %v76, 1
      %vm79 = vmpackc.low %vm77, %vm77
      %vm80 = vmpackc.even %vm79, %vm79
      %vm81 = vmpackc.low %vm78, %vm78
      %vm82 = vmpackc.even %vm81, %vm81
      %v83 = vsel %vm80, 2155905152, %v69
      %v84 = vsel %vm82, 2155905152, %v70
      %v85 = vsel %vm80, 2155905152, %v71
      %v86 = vsel %vm82, 2155905152, %v72
      %v87 = vsel %vm80, 2155905152, %v73
      %v88 = vsel %vm82, 2155905152, %v74
      %vm89 = vcmask 123904
      %90 = vst.msk [vmem:[#allocation7] sm:$0x3] %vm89, %v83
      %91 = vst.msk [vmem:[#allocation7 + $0x2] sm:$0x3] %vm89, %v84
      %92 = vst.msk [vmem:[#allocation7 + $0x4] sm:$0x3] %vm89, %v85
      %93 = vst.msk [vmem:[#allocation7 + $0x6] sm:$0x3] %vm89, %v86
      %94 = vst.msk [vmem:[#allocation7 + $0x8] sm:$0x3] %vm89, %v87
      %95 = vst.msk [vmem:[#allocation7 + $0xa] sm:$0x3] %vm89, %v88
    $region13: #{tpu_custom_call.1} parent=1 // pred_fallthru
      _
    %p96 = pneg %p42
    // Predicated region
    $region14: #{tpu_custom_call.1} parent=1 // pred_check
      _
    $region15: #{tpu_custom_call.1} parent=1 // pred_check_branch
      %98 = sbr.rel (%p42) target = $region17
    $region16: #{tpu_custom_call.1} parent=1 // pred_region
      %v99 = vld [vmem:[#allocation4] sm:$0x3]
      %v100 = vld [vmem:[#allocation4 + $0x2] sm:$0x3]
      %v101 = vld [vmem:[#allocation4 + $0x4] sm:$0x3]
      %v102 = vld [vmem:[#allocation4 + $0x6] sm:$0x3]
      %v103 = vld [vmem:[#allocation4 + $0x8] sm:$0x3]
      %v104 = vld [vmem:[#allocation4 + $0xa] sm:$0x3]
      %vm105 = vcmask 123904
      %106 = vst.msk [vmem:[#allocation7] sm:$0x3] %vm105, %v99
      %107 = vst.msk [vmem:[#allocation7 + $0x2] sm:$0x3] %vm105, %v100
      %108 = vst.msk [vmem:[#allocation7 + $0x4] sm:$0x3] %vm105, %v101
      %109 = vst.msk [vmem:[#allocation7 + $0x6] sm:$0x3] %vm105, %v102
      %110 = vst.msk [vmem:[#allocation7 + $0x8] sm:$0x3] %vm105, %v103
      %111 = vst.msk [vmem:[#allocation7 + $0xa] sm:$0x3] %vm105, %v104
    $region17: #{tpu_custom_call.1} parent=1 // pred_fallthru
      _
    // Predicated region
    $region18: #{tpu_custom_call.1} parent=1 // pred_check
      _
    $region19: #{tpu_custom_call.1} parent=1 // pred_check_branch
      %113 = sbr.rel (0) target = $region21
    $region20: #{tpu_custom_call.1} parent=1 // pred_region
      %s115 = ssub.s32 192, 192
      %116 = vsyncadd [#allocation6], %s115
      %s117 = sshll.u32 [#allocation7], 4
      %s118 = int_to_ptr.vmem [resolvable:$true] %s117
      %123 = dma.vmem_to_hbm [thread:$0]  %s118, 192, %s2, [#allocation6], 32, 32, 2
    $region21: #{tpu_custom_call.1} parent=1 // pred_fallthru
      _
    // Predicated region
    $region22: #{tpu_custom_call.1} parent=1 // pred_check
      _
    $region23: #{tpu_custom_call.1} parent=1 // pred_check_branch
      %125 = sbr.rel (0) target = $region25
    $region24: #{tpu_custom_call.1} parent=1 // pred_region
      %126 = dma.done [#allocation6], 192
    $region25: #{tpu_custom_call.1} parent=1 // pred_fallthru
      _
    %127 = vsyncpa [#allocation5], 1
    %128 = vsyncpa [#allocation6], 1

</llo_original>
